<compile_context>
chip_gen: v6e
topology: v6e:2x2x1
jax: 0.10.0
libtpu: 0.0.40
codegen_flags: <defaults>
</compile_context>

<pallas_src>
import functools

import jax
import jax.numpy as jnp
from jax.experimental import pallas as pl
from jax.experimental.pallas import tpu as pltpu


_VMEM_BUDGET_BYTES = 12 * 1024 * 1024   # budget for double-buffered input blocks


# ---------------------------------------------------------------------------
# Fused path: one kernel computes the whole GeM over all feature maps.
# ---------------------------------------------------------------------------
def _gem_fused_kernel(p_ref, *refs, eps, inv_total_n):
    """refs = (x_ref_0, ..., x_ref_{F-1}, out_ref).

    Each x_ref is a (bc_tile, N_f) block of one flattened feature map.
    out_ref is the (bc_tile, 1) f32 GeM result for this B*C tile.
    """
    x_refs, o_ref = refs[:-1], refs[-1]
    p = p_ref[0]                                     # learnable scalar p (SMEM)

    acc = None
    for x_ref in x_refs:
        x = x_ref[...].astype(jnp.float32)           # compute in f32
        xc = jnp.maximum(x, eps)                     # clamp(min=eps)  (xc > 0)
        xp = jnp.exp(p * jnp.log(xc))                # xc ** p, traced exponent (EUP)
        s = jnp.sum(xp, axis=-1, keepdims=True)      # reduce over spatial lanes (XLU)
        acc = s if acc is None else acc + s

    mean = acc * inv_total_n                         # divide by TRUE total N
    o_ref[...] = jnp.exp(jnp.log(mean) / p)          # mean ** (1/p), mean > 0


def _gem_fused(xs, p, eps, total_n, bc_tile):
    """Single pallas_call over all flattened feature maps. Returns (B*C, 1) f32."""
    BC = xs[0].shape[0]
    grid = (pl.cdiv(BC, bc_tile),)

    in_specs = [pl.BlockSpec(memory_space=pltpu.SMEM)]       # scalar p
    for x in xs:
        # Full spatial extent per B*C tile; legal even if N_f % 128 != 0.
        in_specs.append(pl.BlockSpec((bc_tile, x.shape[1]), lambda i: (i, 0)))

    kernel = functools.partial(
        _gem_fused_kernel, eps=eps, inv_total_n=1.0 / float(total_n)
    )
    return pl.pallas_call(
        kernel,
        out_shape=jax.ShapeDtypeStruct((BC, 1), jnp.float32),
        grid=grid,
        in_specs=in_specs,
        out_specs=pl.BlockSpec((bc_tile, 1), lambda i: (i, 0)),
        compiler_params=pltpu.CompilerParams(
            dimension_semantics=("parallel",)
        ),
    )(p, *xs)


def _choose_bc_tile(BC, bytes_per_row):
    """Largest B*C tile whose double-buffered input blocks fit the VMEM budget.

    Tile must be a multiple of 8 or equal the full B*C extent. Returns None if
    even an 8-row tile blows the budget (then use the tiled fallback).
    """
    cands = []
    if BC <= 512:
        cands.append(BC)
    cands.extend(t for t in (512, 256, 128, 64, 32, 16, 8) if t < BC)
    for t in cands:
        if 2 * t * bytes_per_row <= _VMEM_BUDGET_BYTES:
            return t
    return None


# ---------------------------------------------------------------------------
# Tiled fallback: per-feature-map partial pow-sums (for huge spatial maps).
# ---------------------------------------------------------------------------
def _gem_partial_kernel(p_ref, x_ref, acc_ref, *, eps, n_valid, n_tile, mask_tail):
    """Accumulate sum(clamp(x, eps) ** p) over the lane (N) axis."""
    k = pl.program_id(1)

    @pl.when(k == 0)
    def _init():
        acc_ref[...] = jnp.zeros_like(acc_ref)

    p = p_ref[0]
    x = x_ref[...].astype(jnp.float32)
    xc = jnp.maximum(x, eps)
    xp = jnp.exp(p * jnp.log(xc))
    if mask_tail:                                    # static: only if N % n_tile
        lane = jax.lax.broadcasted_iota(jnp.int32, x.shape, 1) + k * n_tile
        xp = jnp.where(lane < n_valid, xp, 0.0)      # zero out padded lanes
    acc_ref[...] += jnp.sum(xp, axis=-1, keepdims=True)


def _gem_partial_sum(x2d, p, eps):
    """Partial GeM pow-sums for one flattened feature map: (B*C, N) -> (B*C, 1)."""
    BC, N = x2d.shape
    bc_tile = BC if BC <= 256 else 256               # multiple of 8 or full dim
    n_tile = N if N <= 2048 else 2048                # multiple of 128 or full dim
    grid = (pl.cdiv(BC, bc_tile), pl.cdiv(N, n_tile))
    mask_tail = (N % n_tile) != 0

    kernel = functools.partial(
        _gem_partial_kernel, eps=eps, n_valid=N, n_tile=n_tile, mask_tail=mask_tail
    )
    return pl.pallas_call(
        kernel,
        out_shape=jax.ShapeDtypeStruct((BC, 1), jnp.float32),
        grid=grid,
        in_specs=[
            pl.BlockSpec(memory_space=pltpu.SMEM),                 # scalar p
            pl.BlockSpec((bc_tile, n_tile), lambda i, k: (i, k)),  # feature tile
        ],
        out_specs=pl.BlockSpec((bc_tile, 1), lambda i, k: (i, 0)),
        compiler_params=pltpu.CompilerParams(
            dimension_semantics=("parallel", "arbitrary")
        ),
    )(p, x2d)


def _gem_tiled(xs, p, eps, total_n):
    total = None
    for x in xs:
        part = _gem_partial_sum(x, p, eps)           # (B*C, 1) partial pow-sum
        total = part if total is None else total + part
    mean = total[:, 0] / jnp.float32(total_n)
    return (mean ** (1.0 / p[0]))[:, None]           # (B*C, 1)


# ---------------------------------------------------------------------------
# Public wrapper: GeMMultiFeatureMapsFusion.forward
# ---------------------------------------------------------------------------
def gem_multi_feature_maps_fusion(features, p, eps: float = 1e-6):
    """features: dict[str, (B, C, H, W) array or None]; p: (1,) f32 param."""
    feats = [v for v in features.values() if v is not None]
    B, C = int(feats[0].shape[0]), int(feats[0].shape[1])
    BC = B * C
    pf = p.astype(jnp.float32)

    xs = []
    for f in feats:
        x2d = f.reshape(BC, -1)                      # zero-copy flatten, no concat
        if x2d.dtype not in (jnp.float32, jnp.bfloat16):
            x2d = x2d.astype(jnp.float32)
        xs.append(x2d)
    total_n = sum(int(x.shape[1]) for x in xs)

    bytes_per_row = sum(int(x.shape[1]) * x.dtype.itemsize for x in xs)
    bc_tile = _choose_bc_tile(BC, bytes_per_row)

    if bc_tile is not None:
        out2d = _gem_fused(xs, pf, eps, total_n, bc_tile)   # single fused kernel
    else:
        out2d = _gem_tiled(xs, pf, eps, total_n)            # huge-spatial fallback

    out = out2d[:, 0].reshape(B, C)
    # PyTorch: `if len(out.shape) == 1: out = out.unsqueeze(0)` — GeM output is
    # always 2-D (B, C) here, so that branch never triggers.
    return out


# ---------------------------------------------------------------------------
# Reference + test
# ---------------------------------------------------------------------------
def _reference(features, p, eps=1e-6):
    feats = [v for v in features.values() if v is not None]
    feats = [f.reshape(f.shape[0], f.shape[1], -1) for f in feats]
    x = jnp.concatenate(feats, axis=-1).astype(jnp.float32)
    pv = p.astype(jnp.float32)[0]
    return jnp.mean(jnp.maximum(x, eps) ** pv, axis=-1) ** (1.0 / pv)


if __name__ == "__main__":
    key = jax.random.PRNGKey(0)
    k1, k2 = jax.random.split(key)

    # Two modalities with the same (B, C) but different spatial sizes.
    B, C = 2, 4
    data = {
        "image_feats": jax.random.normal(k1, (B, C, 16, 16), dtype=jnp.float32),
        "cloud_feats": jax.random.normal(k2, (B, C, 8, 8), dtype=jnp.float32),
        "missing": None,   # dropped, like in the PyTorch forward
    }

    # Learnable parameter p, deterministically initialized to 3.0 (as in __init__).
    p = jnp.ones((1,), dtype=jnp.float32) * 3.0

    ref = _reference(data, p)

    # Primary (fused, single-kernel) path.
    out = gem_multi_feature_maps_fusion(data, p)
    out = jax.block_until_ready(out)
    assert out.shape == (B, C), out.shape
    assert jnp.allclose(out, ref, atol=1e-5, rtol=1e-4), (out, ref)

    # Also exercise the tiled fallback path for coverage.
    xs = [data["image_feats"].reshape(B * C, -1),
          data["cloud_feats"].reshape(B * C, -1)]
    out_tiled = _gem_tiled(xs, p.astype(jnp.float32), 1e-6,
                           sum(x.shape[1] for x in xs))
    out_tiled = jax.block_until_ready(out_tiled)[:, 0].reshape(B, C)
    assert jnp.allclose(out_tiled, ref, atol=1e-5, rtol=1e-4), (out_tiled, ref)

    print("KERNEL_OK")
</pallas_src>

<mosaic_0001>
module attributes {stable_mosaic.version = 11 : i64} {
  func.func @_gem_fused_kernel(%arg0: i32, %arg1: memref<1xf32, #tpu.memory_space<smem>>, %arg2: memref<8x256xf32, #tpu.memory_space<vmem>>, %arg3: memref<8x64xf32, #tpu.memory_space<vmem>>, %arg4: memref<8x1xf32, #tpu.memory_space<vmem>>) attributes {dimension_semantics = [#tpu.dimension_semantics<parallel>], iteration_bounds = array<i64: 1>, scalar_prefetch = 0 : i64, scratch_operands = 0 : i64, tpu.core_type = #tpu.core_type<tc>, window_params = [{transform_indices = @transform_0, window_bounds = array<i64: 1>}, {transform_indices = @transform_1, window_bounds = array<i64: 8, 256>}, {transform_indices = @transform_2, window_bounds = array<i64: 8, 64>}, {transform_indices = @transform_3, window_bounds = array<i64: 8, 1>}]} {
    %c0 = arith.constant 0 : index
    %0 = memref.load %arg1[%c0] : memref<1xf32, #tpu.memory_space<smem>>
    %c0_0 = arith.constant 0 : index
    %c0_1 = arith.constant 0 : index
    %1 = vector.load %arg2[%c0_0, %c0_1] : memref<8x256xf32, #tpu.memory_space<vmem>>, vector<8x256xf32>
    %cst = arith.constant 9.99999997E-7 : f32
    %2 = vector.broadcast %cst : f32 to vector<8x256xf32>
    %3 = arith.maximumf %1, %2 : vector<8x256xf32>
    %4 = math.log %3 : vector<8x256xf32>
    %5 = vector.broadcast %0 : f32 to vector<8x256xf32>
    %6 = arith.mulf %5, %4 : vector<8x256xf32>
    %7 = math.exp %6 : vector<8x256xf32>
    %cst_2 = arith.constant dense<0.000000e+00> : vector<8xf32>
    %8 = vector.multi_reduction <add>, %7, %cst_2 [1] : vector<8x256xf32> to vector<8xf32>
    %9 = vector.shape_cast %8 : vector<8xf32> to vector<8x1xf32>
    %c0_3 = arith.constant 0 : index
    %c0_4 = arith.constant 0 : index
    %10 = vector.load %arg3[%c0_3, %c0_4] : memref<8x64xf32, #tpu.memory_space<vmem>>, vector<8x64xf32>
    %cst_5 = arith.constant 9.99999997E-7 : f32
    %11 = vector.broadcast %cst_5 : f32 to vector<8x64xf32>
    %12 = arith.maximumf %10, %11 : vector<8x64xf32>
    %13 = math.log %12 : vector<8x64xf32>
    %14 = vector.broadcast %0 : f32 to vector<8x64xf32>
    %15 = arith.mulf %14, %13 : vector<8x64xf32>
    %16 = math.exp %15 : vector<8x64xf32>
    %cst_6 = arith.constant dense<0.000000e+00> : vector<8xf32>
    %17 = vector.multi_reduction <add>, %16, %cst_6 [1] : vector<8x64xf32> to vector<8xf32>
    %18 = vector.shape_cast %17 : vector<8xf32> to vector<8x1xf32>
    %19 = arith.addf %9, %18 : vector<8x1xf32>
    %cst_7 = arith.constant 3.125000e-03 : f32
    %20 = vector.broadcast %cst_7 : f32 to vector<8x1xf32>
    %21 = arith.mulf %19, %20 : vector<8x1xf32>
    %22 = math.log %21 : vector<8x1xf32>
    %23 = vector.broadcast %0 : f32 to vector<8x1xf32>
    %24 = arith.divf %22, %23 : vector<8x1xf32>
    %25 = math.exp %24 : vector<8x1xf32>
    %c0_8 = arith.constant 0 : index
    %c0_9 = arith.constant 0 : index
    %26 = vector.load %arg4[%c0_8, %c0_9] : memref<8x1xf32, #tpu.memory_space<vmem>>, vector<8x1xf32>
    tpu.vector_store %arg4[%c0_8, %c0_9], %25 {strides = array<i32>} : memref<8x1xf32, #tpu.memory_space<vmem>>, vector<8x1xf32>,
    return
  }
  func.func @transform_0(%arg0: i32) -> i32 {
    %c0_i32 = arith.constant 0 : i32
    %c0_i32_0 = arith.constant 0 : i32
    return %c0_i32 : i32
  }
  func.func @transform_1(%arg0: i32) -> (i32, i32) {
    %c0_i32 = arith.constant 0 : i32
    %c0_i32_0 = arith.constant 0 : i32
    return %arg0, %c0_i32 : i32, i32
  }
  func.func @transform_2(%arg0: i32) -> (i32, i32) {
    %c0_i32 = arith.constant 0 : i32
    %c0_i32_0 = arith.constant 0 : i32
    return %arg0, %c0_i32 : i32, i32
  }
  func.func @transform_3(%arg0: i32) -> (i32, i32) {
    %c0_i32 = arith.constant 0 : i32
    %c0_i32_0 = arith.constant 0 : i32
    return %arg0, %c0_i32 : i32, i32
  }
}

</mosaic_0001>

<llo_original>
// kernel: tpu_custom_call.1
$region0: #{tpu_custom_call.1}
  #allocation0 [shape = 'u32[]', space=smem, size = 0x4, offset = 0x4, fixed_abs, tag = 'smem constant byte address 0x4 - core index']
  #allocation1 [shape = 'u32[144,128]{1,0:T(1,128)}', space=vmem, size = 0x12000, scoped, tag = 'internal scratch']
  #allocation2 [shape = 'f32[1]{0:T(128)S(6)}', space=smem, size = 0x200, scoped, tag = 'scoped memory for tpu_custom_call.1']
  %s0 = inlined_call_operand.<no memory space> [shape: f32[1], index: 0, kind: input, shape index: {}]
  %s1 = inlined_call_operand.hbm [shape: f32[8,256], index: 1, kind: input, shape index: {}]
  %s2 = inlined_call_operand.hbm [shape: f32[8,64], index: 2, kind: input, shape index: {}]
  %s3 = inlined_call_operand.vmem [shape: f32[8,1], index: 3, kind: output, shape index: {}]
  %s4 = sld [smem:[#allocation0]]
  $region30: #{tpu_custom_call.1} parent=0
    _
  %s6 = ssub.s32 1, %s4
  %s7 = scalar_select 0, %s6, %s4
  %8 = sst [smem:[#allocation2]] %s0
  $region1: #{tpu_custom_call.1} parent=0
    #allocation3 [shape = 'u8[8192]{0}', space=vmem, size = 0x2000, scoped, tag = 'input window, operand 1, single buffered']
    #allocation4 [shape = 's32[1]{0}', space=sflag, size = 0x4, scoped, tag = 'scoped memory for tpu_custom_call.1']
    #allocation5 [shape = 'u8[4096]{0}', space=vmem, size = 0x1000, scoped, tag = 'input window, operand 2, single buffered']
    #allocation6 [shape = 's32[1]{0}', space=sflag, size = 0x4, scoped, tag = 'scoped memory for tpu_custom_call.1']
    %9 = vsyncpa [#allocation4], 0
    %10 = vsyncpa [#allocation6], 0
    // Predicated region
    $region2: #{tpu_custom_call.1} parent=1 // pred_check
      _
    $region3: #{tpu_custom_call.1} parent=1 // pred_check_branch
      %12 = sbr.rel (0) target = $region5
    $region4: #{tpu_custom_call.1} parent=1 // pred_region
      _
    $region5: #{tpu_custom_call.1} parent=1 // pred_fallthru
      _
    // Predicated region
    $region6: #{tpu_custom_call.1} parent=1 // pred_check
      _
    $region7: #{tpu_custom_call.1} parent=1 // pred_check_branch
      %14 = sbr.rel (0) target = $region9
    $region8: #{tpu_custom_call.1} parent=1 // pred_region
      %s16 = ssub.s32 256, 256
      %17 = vsyncadd [#allocation4], %s16
      %s19 = sshll.u32 [#allocation3], 4
      %s20 = int_to_ptr.vmem [resolvable:$true] %s19
      %22 = dma.hbm_to_vmem [thread:$0]  %s1, 256, %s20, [#allocation4]
    $region9: #{tpu_custom_call.1} parent=1 // pred_fallthru
      _
    // Predicated region
    $region10: #{tpu_custom_call.1} parent=1 // pred_check
      _
    $region11: #{tpu_custom_call.1} parent=1 // pred_check_branch
      %24 = sbr.rel (0) target = $region13
    $region12: #{tpu_custom_call.1} parent=1 // pred_region
      %s26 = ssub.s32 128, 128
      %27 = vsyncadd [#allocation6], %s26
      %s29 = sshll.u32 [#allocation5], 4
      %s30 = int_to_ptr.vmem [resolvable:$true] %s29
      %32 = dma.hbm_to_vmem [thread:$0]  %s2, 128, %s30, [#allocation6]
    $region13: #{tpu_custom_call.1} parent=1 // pred_fallthru
      _
    // Predicated region
    $region14: #{tpu_custom_call.1} parent=1 // pred_check
      _
    $region15: #{tpu_custom_call.1} parent=1 // pred_check_branch
      %34 = sbr.rel (0) target = $region17
    $region16: #{tpu_custom_call.1} parent=1 // pred_region
      %35 = dma.done [#allocation4], 256
    $region17: #{tpu_custom_call.1} parent=1 // pred_fallthru
      _
    // Predicated region
    $region18: #{tpu_custom_call.1} parent=1 // pred_check
      _
    $region19: #{tpu_custom_call.1} parent=1 // pred_check_branch
      %37 = sbr.rel (0) target = $region21
    $region20: #{tpu_custom_call.1} parent=1 // pred_region
      %38 = dma.done [#allocation6], 128
    $region21: #{tpu_custom_call.1} parent=1 // pred_fallthru
      _
    %s39 = sld [smem:[#allocation2]]
    %v40 = vld [vmem:[#allocation3] sm:$0xff]
    %v41 = vld [vmem:[#allocation3 + $0x8] sm:$0xff]
    %v42 = vmax.f32 %v40, 1e-06
    %v43 = vmax.f32 %v41, 1e-06
    %v44 = vlog2.pop %v42
    %v45 = vmul.f32 %v44, 0.6931472
    %v46 = vlog2.pop %v43
    %v47 = vmul.f32 %v46, 0.6931472
    %v48 = vstv %s39
    %v49 = vmul.f32 %v48, %v45
    %v50 = vmul.f32 %v48, %v47
    %v51 = vmul.f32 %v49, 1.442695
    %v52 = vpow.pop %v51
    %v53 = vmul.f32 %v50, 1.442695
    %v54 = vpow.pop %v53
    %v55 = vadd.f32 %v52, %v54
    %56 = vadd.xlane.f32.xlu0 %v55
    %v57 = vpop.xlane.xlu0 %56
    %v58 = vld [vmem:[#allocation5] sm:$0xff]
    %v59 = vmax.f32 %v58, 1e-06
    %v60 = vlog2.pop %v59
    %v61 = vmul.f32 %v60, 0.6931472
    %v62 = vmul.f32 %v48, %v61
    %v63 = vmul.f32 %v62, 1.442695
    %v64 = vpow.pop %v63
    %vm65 = vcmask 523264
    %v66 = vsel %vm65, %v64, 0.0
    %67 = vadd.xlane.f32.xlu0 %v66
    %v68 = vpop.xlane.xlu0 %67
    %v69 = vadd.f32 %v57, %v68
    %v70 = vmul.f32 %v69, 0.003125
    %v71 = vlog2.pop %v70
    %v72 = vmul.f32 %v71, 0.6931472
    %v73 = vrcp.pop %v48
    %v74 = vmul.f32 %v72, %v73
    %v75 = vmul.f32 %v74, 1.442695
    %v76 = vpow.pop %v75
    %vm77 = vcmask 7168
    %78 = vst.msk [vmem:[%s3] sm:$0xff] %vm77, %v76
    // Predicated region
    $region22: #{tpu_custom_call.1} parent=1 // pred_check
      _
    $region23: #{tpu_custom_call.1} parent=1 // pred_check_branch
      %80 = sbr.rel (0) target = $region25
    $region24: #{tpu_custom_call.1} parent=1 // pred_region
      _
    $region25: #{tpu_custom_call.1} parent=1 // pred_fallthru
      _
    // Predicated region
    $region26: #{tpu_custom_call.1} parent=1 // pred_check
      _
    $region27: #{tpu_custom_call.1} parent=1 // pred_check_branch
      %82 = sbr.rel (0) target = $region29
    $region28: #{tpu_custom_call.1} parent=1 // pred_region
      _
    $region29: #{tpu_custom_call.1} parent=1 // pred_fallthru
      _
    %83 = vsyncpa [#allocation4], 1
    %84 = vsyncpa [#allocation6], 1

</llo_original>
